<compile_context>
chip_gen: v7x
topology: tpu7x:2x2x1
jax: 0.10.0
libtpu: 0.0.40
codegen_flags: <defaults>
</compile_context>

<pallas_src>
import functools
import math

import jax
import jax.numpy as jnp
from jax.experimental import pallas as pl
from jax.experimental.pallas import tpu as pltpu


def _shift_lanes(y, zeros, off):
    """shifted[:, l] = y[:, l + off], zero outside [0, L) (static off, lane axis)."""
    if off == 0:
        return y
    if off > 0:
        return jnp.concatenate([y[:, off:], zeros[:, :off]], axis=-1)
    return jnp.concatenate([zeros[:, :(-off)], y[:, :off]], axis=-1)


def pathconv_stem_kernel(x_ref, w1_ref, b1_ref, w2_ref, b2_ref, g_ref, beta_ref,
                         o_ref, *, ks, eps):
    # x_ref   : (1, iDim, L)  current batch element
    # w1_ref  : (oDim, iDim)  pointwise conv weight
    # b1_ref  : (oDim, 1)     pointwise conv bias
    # w2_ref  : (oDim, ks)    depthwise conv weight
    # b2_ref  : (oDim, 1)     depthwise conv bias
    # g_ref   : (oDim, 1)     LayerNorm gamma
    # beta_ref: (oDim, 1)     LayerNorm beta
    # o_ref   : (1, oDim, L)
    x = x_ref[0]                                                   # (iDim, L)

    # --- conv1: 1x1 conv == channel-mixing matmul on the MXU --------------
    y = jnp.dot(w1_ref[...], x, preferred_element_type=jnp.float32)
    y = y + b1_ref[...]                                            # (oDim, L)

    # --- conv2a: depthwise conv along L, 'same' zero padding (VPU) --------
    pad = (ks - 1) // 2
    zeros = jnp.zeros_like(y)
    acc = jnp.zeros_like(y)
    for k in range(ks):                    # static unroll, ks is small
        acc = acc + w2_ref[:, k:k + 1] * _shift_lanes(y, zeros, k - pad)
    z = acc + b2_ref[...]

    # --- conv2b: channel-first LayerNorm (reduce over the channel axis) ---
    u = jnp.mean(z, axis=0, keepdims=True)                         # (1, L)
    d = z - u
    s = jnp.mean(d * d, axis=0, keepdims=True)
    zn = d * jax.lax.rsqrt(s + eps)
    o_ref[0] = (g_ref[...] * zn + beta_ref[...]).astype(o_ref.dtype)


def pathconv_stem(x, w1, b1, w2, b2, ln_w, ln_b, *, eps=1e-6):
    """x: [B, iDim, L]; w1: [oDim, iDim]; w2: [oDim, ks]; b1/b2/ln_w/ln_b: [oDim]."""
    B, iDim, L = x.shape
    oDim, ks = w2.shape
    assert w1.shape == (oDim, iDim)
    assert ks % 2 == 1, "odd kernel size expected for 'same' output length"

    col = lambda v: v.reshape(oDim, 1).astype(jnp.float32)
    kernel = functools.partial(pathconv_stem_kernel, ks=ks, eps=eps)

    # TODO(synk): for very long sequences, tile L with a (ks-1)//2 halo per block
    # instead of keeping the full row resident in VMEM.
    return pl.pallas_call(
        kernel,
        out_shape=jax.ShapeDtypeStruct((B, oDim, L), x.dtype),
        grid_spec=pltpu.PrefetchScalarGridSpec(
            num_scalar_prefetch=0,
            grid=(B,),
            in_specs=[
                pl.BlockSpec((1, iDim, L), lambda b: (b, 0, 0)),   # per-batch input slab
                pl.BlockSpec((oDim, iDim), lambda b: (0, 0)),      # weights stay resident
                pl.BlockSpec((oDim, 1), lambda b: (0, 0)),
                pl.BlockSpec((oDim, ks), lambda b: (0, 0)),
                pl.BlockSpec((oDim, 1), lambda b: (0, 0)),
                pl.BlockSpec((oDim, 1), lambda b: (0, 0)),
                pl.BlockSpec((oDim, 1), lambda b: (0, 0)),
            ],
            out_specs=pl.BlockSpec((1, oDim, L), lambda b: (b, 0, 0)),
        ),
        compiler_params=pltpu.CompilerParams(
            dimension_semantics=("parallel",),   # batch elements are independent
        ),
    )(x, w1, col(b1), w2, col(b2), col(ln_w), col(ln_b))


def _reference(x, w1, b1, w2, b2, ln_w, ln_b, eps=1e-6):
    """Pure-JAX mirror of the PyTorch forward (conv1 -> depthwise conv -> LayerNorm)."""
    B, iDim, L = x.shape
    oDim, ks = w2.shape
    pad = (ks - 1) // 2
    y = jnp.einsum('oi,bil->bol', w1, x,
                   precision=jax.lax.Precision.HIGHEST) + b1[None, :, None]
    ypad = jnp.pad(y, ((0, 0), (0, 0), (pad, pad)))
    z = sum(w2[None, :, k:k + 1] * ypad[:, :, k:k + L] for k in range(ks))
    z = z + b2[None, :, None]
    u = z.mean(axis=1, keepdims=True)
    s = ((z - u) ** 2).mean(axis=1, keepdims=True)
    zn = (z - u) / jnp.sqrt(s + eps)
    return ln_w[None, :, None] * zn + ln_b[None, :, None]


if __name__ == "__main__":
    key = jax.random.PRNGKey(0)
    B, iDim, L = 2, 4, 256        # L = 16*16 flattened spatial/path length
    oDim, ks, nPath = 32, 3, 4    # nPath is stored by the module but unused in forward()

    kx, k1, k2, k3, k4, k5, k6 = jax.random.split(key, 7)
    x = jax.random.normal(kx, (B, iDim, L), dtype=jnp.float32)
    w1 = jax.random.normal(k1, (oDim, iDim), jnp.float32) / math.sqrt(iDim)
    b1 = 0.1 * jax.random.normal(k2, (oDim,), jnp.float32)
    w2 = jax.random.normal(k3, (oDim, ks), jnp.float32) / math.sqrt(ks)
    b2 = 0.1 * jax.random.normal(k4, (oDim,), jnp.float32)
    ln_w = 1.0 + 0.1 * jax.random.normal(k5, (oDim,), jnp.float32)
    ln_b = 0.1 * jax.random.normal(k6, (oDim,), jnp.float32)

    out = pathconv_stem(x, w1, b1, w2, b2, ln_w, ln_b)
    out = jax.block_until_ready(out)

    ref = _reference(x, w1, b1, w2, b2, ln_w, ln_b)
    assert out.shape == (B, oDim, L), out.shape
    err = float(jnp.max(jnp.abs(out - ref)))
    assert jnp.allclose(out, ref, atol=1e-3, rtol=1e-3), f"max abs err = {err}"
    print("KERNEL_OK")
</pallas_src>

<mosaic_0001>
module attributes {stable_mosaic.version = 11 : i64} {
  func.func @pathconv_stem_kernel(%arg0: i32, %arg1: memref<1x4x256xf32, #tpu.memory_space<vmem>>, %arg2: memref<32x4xf32, #tpu.memory_space<vmem>>, %arg3: memref<32x1xf32, #tpu.memory_space<vmem>>, %arg4: memref<32x3xf32, #tpu.memory_space<vmem>>, %arg5: memref<32x1xf32, #tpu.memory_space<vmem>>, %arg6: memref<32x1xf32, #tpu.memory_space<vmem>>, %arg7: memref<32x1xf32, #tpu.memory_space<vmem>>, %arg8: memref<1x32x256xf32, #tpu.memory_space<vmem>>) attributes {dimension_semantics = [#tpu.dimension_semantics<parallel>], iteration_bounds = array<i64: 2>, scalar_prefetch = 0 : i64, scratch_operands = 0 : i64, tpu.core_type = #tpu.core_type<tc>, window_params = [{transform_indices = @transform_0, window_bounds = array<i64: 1, 4, 256>}, {pipeline_mode = #tpu.pipeline_mode<synchronous>, transform_indices = @transform_1, window_bounds = array<i64: 32, 4>}, {pipeline_mode = #tpu.pipeline_mode<synchronous>, transform_indices = @transform_2, window_bounds = array<i64: 32, 1>}, {pipeline_mode = #tpu.pipeline_mode<synchronous>, transform_indices = @transform_3, window_bounds = array<i64: 32, 3>}, {pipeline_mode = #tpu.pipeline_mode<synchronous>, transform_indices = @transform_4, window_bounds = array<i64: 32, 1>}, {pipeline_mode = #tpu.pipeline_mode<synchronous>, transform_indices = @transform_5, window_bounds = array<i64: 32, 1>}, {pipeline_mode = #tpu.pipeline_mode<synchronous>, transform_indices = @transform_6, window_bounds = array<i64: 32, 1>}, {transform_indices = @transform_7, window_bounds = array<i64: 1, 32, 256>}]} {
    %c0 = arith.constant 0 : index
    %c0_0 = arith.constant 0 : index
    %c0_1 = arith.constant 0 : index
    %0 = vector.load %arg1[%c0, %c0_0, %c0_1] : memref<1x4x256xf32, #tpu.memory_space<vmem>>, vector<1x4x256xf32>
    %1 = vector.shape_cast %0 : vector<1x4x256xf32> to vector<4x256xf32>
    %c0_2 = arith.constant 0 : index
    %c0_3 = arith.constant 0 : index
    %2 = vector.load %arg2[%c0_2, %c0_3] : memref<32x4xf32, #tpu.memory_space<vmem>>, vector<32x4xf32>
    %cst = arith.constant dense<0.000000e+00> : vector<32x256xf32>
    %3 = tpu.matmul %2, %1, %cst {dimension_numbers = #tpu.dot_dimension_numbers<[1], [0], [0], [1], [0, 0, 1, 1], [], []>} : vector<32x4xf32>, vector<4x256xf32>, vector<32x256xf32> -> vector<32x256xf32>
    %c0_4 = arith.constant 0 : index
    %c0_5 = arith.constant 0 : index
    %4 = vector.load %arg3[%c0_4, %c0_5] : memref<32x1xf32, #tpu.memory_space<vmem>>, vector<32x1xf32>
    %5 = vector.broadcast %4 : vector<32x1xf32> to vector<32x256xf32>
    %6 = arith.addf %3, %5 : vector<32x256xf32>
    %cst_6 = arith.constant 0.000000e+00 : f32
    %7 = vector.broadcast %cst_6 : f32 to vector<32x256xf32>
    %cst_7 = arith.constant 0.000000e+00 : f32
    %8 = vector.broadcast %cst_7 : f32 to vector<32x256xf32>
    %c0_8 = arith.constant 0 : index
    %c0_9 = arith.constant 0 : index
    %9 = vector.load %arg4[%c0_8, %c0_9] : memref<32x3xf32, #tpu.memory_space<vmem>>, vector<32x1xf32>
    %10 = vector.extract_strided_slice %7 {offsets = [0, 0], sizes = [32, 1], strides = [1, 1]} : vector<32x256xf32> to vector<32x1xf32>
    %11 = vector.extract_strided_slice %6 {offsets = [0, 0], sizes = [32, 255], strides = [1, 1]} : vector<32x256xf32> to vector<32x255xf32>
    %12 = tpu.concatenate %10, %11 in 1 : vector<32x1xf32>, vector<32x255xf32> -> vector<32x256xf32>
    %13 = vector.broadcast %9 : vector<32x1xf32> to vector<32x256xf32>
    %14 = arith.mulf %13, %12 : vector<32x256xf32>
    %15 = arith.addf %8, %14 : vector<32x256xf32>
    %c0_10 = arith.constant 0 : index
    %c1 = arith.constant 1 : index
    %16 = vector.load %arg4[%c0_10, %c1] : memref<32x3xf32, #tpu.memory_space<vmem>>, vector<32x1xf32>
    %17 = vector.broadcast %16 : vector<32x1xf32> to vector<32x256xf32>
    %18 = arith.mulf %17, %6 : vector<32x256xf32>
    %19 = arith.addf %15, %18 : vector<32x256xf32>
    %c0_11 = arith.constant 0 : index
    %c2 = arith.constant 2 : index
    %20 = vector.load %arg4[%c0_11, %c2] : memref<32x3xf32, #tpu.memory_space<vmem>>, vector<32x1xf32>
    %21 = vector.extract_strided_slice %6 {offsets = [0, 1], sizes = [32, 255], strides = [1, 1]} : vector<32x256xf32> to vector<32x255xf32>
    %22 = vector.extract_strided_slice %7 {offsets = [0, 0], sizes = [32, 1], strides = [1, 1]} : vector<32x256xf32> to vector<32x1xf32>
    %23 = tpu.concatenate %21, %22 in 1 : vector<32x255xf32>, vector<32x1xf32> -> vector<32x256xf32>
    %24 = vector.broadcast %20 : vector<32x1xf32> to vector<32x256xf32>
    %25 = arith.mulf %24, %23 : vector<32x256xf32>
    %26 = arith.addf %19, %25 : vector<32x256xf32>
    %c0_12 = arith.constant 0 : index
    %c0_13 = arith.constant 0 : index
    %27 = vector.load %arg5[%c0_12, %c0_13] : memref<32x1xf32, #tpu.memory_space<vmem>>, vector<32x1xf32>
    %28 = vector.broadcast %27 : vector<32x1xf32> to vector<32x256xf32>
    %29 = arith.addf %26, %28 : vector<32x256xf32>
    %cst_14 = arith.constant dense<0.000000e+00> : vector<256xf32>
    %30 = vector.multi_reduction <add>, %29, %cst_14 [0] : vector<32x256xf32> to vector<256xf32>
    %31 = vector.shape_cast %30 : vector<256xf32> to vector<1x256xf32>
    %cst_15 = arith.constant 3.200000e+01 : f32
    %32 = vector.broadcast %cst_15 : f32 to vector<1x256xf32>
    %33 = arith.divf %31, %32 : vector<1x256xf32>
    %34 = vector.broadcast %33 : vector<1x256xf32> to vector<32x256xf32>
    %35 = arith.subf %29, %34 : vector<32x256xf32>
    %36 = arith.mulf %35, %35 : vector<32x256xf32>
    %cst_16 = arith.constant dense<0.000000e+00> : vector<256xf32>
    %37 = vector.multi_reduction <add>, %36, %cst_16 [0] : vector<32x256xf32> to vector<256xf32>
    %38 = vector.shape_cast %37 : vector<256xf32> to vector<1x256xf32>
    %cst_17 = arith.constant 3.200000e+01 : f32
    %39 = vector.broadcast %cst_17 : f32 to vector<1x256xf32>
    %40 = arith.divf %38, %39 : vector<1x256xf32>
    %cst_18 = arith.constant 9.99999997E-7 : f32
    %41 = vector.broadcast %cst_18 : f32 to vector<1x256xf32>
    %42 = arith.addf %40, %41 : vector<1x256xf32>
    %43 = math.rsqrt %42 : vector<1x256xf32>
    %44 = vector.broadcast %43 : vector<1x256xf32> to vector<32x256xf32>
    %45 = arith.mulf %35, %44 : vector<32x256xf32>
    %c0_19 = arith.constant 0 : index
    %c0_20 = arith.constant 0 : index
    %46 = vector.load %arg6[%c0_19, %c0_20] : memref<32x1xf32, #tpu.memory_space<vmem>>, vector<32x1xf32>
    %47 = vector.broadcast %46 : vector<32x1xf32> to vector<32x256xf32>
    %48 = arith.mulf %47, %45 : vector<32x256xf32>
    %c0_21 = arith.constant 0 : index
    %c0_22 = arith.constant 0 : index
    %49 = vector.load %arg7[%c0_21, %c0_22] : memref<32x1xf32, #tpu.memory_space<vmem>>, vector<32x1xf32>
    %50 = vector.broadcast %49 : vector<32x1xf32> to vector<32x256xf32>
    %51 = arith.addf %48, %50 : vector<32x256xf32>
    %c0_23 = arith.constant 0 : index
    %c0_24 = arith.constant 0 : index
    %c0_25 = arith.constant 0 : index
    %52 = vector.load %arg8[%c0_23, %c0_24, %c0_25] : memref<1x32x256xf32, #tpu.memory_space<vmem>>, vector<1x32x256xf32>
    %53 = vector.shape_cast %52 : vector<1x32x256xf32> to vector<32x256xf32>
    %54 = vector.shape_cast %51 : vector<32x256xf32> to vector<1x32x256xf32>
    tpu.vector_store %arg8[%c0_23, %c0_24, %c0_25], %54 {strides = array<i32>} : memref<1x32x256xf32, #tpu.memory_space<vmem>>, vector<1x32x256xf32>,
    return
  }
  func.func @transform_0(%arg0: i32) -> (i32, i32, i32) {
    %c0_i32 = arith.constant 0 : i32
    %c0_i32_0 = arith.constant 0 : i32
    %c0_i32_1 = arith.constant 0 : i32
    return %arg0, %c0_i32, %c0_i32_0 : i32, i32, i32
  }
  func.func @transform_1(%arg0: i32) -> (i32, i32) {
    %c0_i32 = arith.constant 0 : i32
    %c0_i32_0 = arith.constant 0 : i32
    %c0_i32_1 = arith.constant 0 : i32
    return %c0_i32, %c0_i32_0 : i32, i32
  }
  func.func @transform_2(%arg0: i32) -> (i32, i32) {
    %c0_i32 = arith.constant 0 : i32
    %c0_i32_0 = arith.constant 0 : i32
    %c0_i32_1 = arith.constant 0 : i32
    return %c0_i32, %c0_i32_0 : i32, i32
  }
  func.func @transform_3(%arg0: i32) -> (i32, i32) {
    %c0_i32 = arith.constant 0 : i32
    %c0_i32_0 = arith.constant 0 : i32
    %c0_i32_1 = arith.constant 0 : i32
    return %c0_i32, %c0_i32_0 : i32, i32
  }
  func.func @transform_4(%arg0: i32) -> (i32, i32) {
    %c0_i32 = arith.constant 0 : i32
    %c0_i32_0 = arith.constant 0 : i32
    %c0_i32_1 = arith.constant 0 : i32
    return %c0_i32, %c0_i32_0 : i32, i32
  }
  func.func @transform_5(%arg0: i32) -> (i32, i32) {
    %c0_i32 = arith.constant 0 : i32
    %c0_i32_0 = arith.constant 0 : i32
    %c0_i32_1 = arith.constant 0 : i32
    return %c0_i32, %c0_i32_0 : i32, i32
  }
  func.func @transform_6(%arg0: i32) -> (i32, i32) {
    %c0_i32 = arith.constant 0 : i32
    %c0_i32_0 = arith.constant 0 : i32
    %c0_i32_1 = arith.constant 0 : i32
    return %c0_i32, %c0_i32_0 : i32, i32
  }
  func.func @transform_7(%arg0: i32) -> (i32, i32, i32) {
    %c0_i32 = arith.constant 0 : i32
    %c0_i32_0 = arith.constant 0 : i32
    %c0_i32_1 = arith.constant 0 : i32
    return %arg0, %c0_i32, %c0_i32_0 : i32, i32, i32
  }
}

</mosaic_0001>

<llo_original>
// kernel: tpu_custom_call.1
$region0: #{tpu_custom_call.1}
  #allocation0 [shape = 'u32[]', space=smem, size = 0x4, offset = 0x4, fixed_abs, tag = 'smem constant byte address 0x4 - core index']
  #allocation1 [shape = 'u32[144,128]{1,0:T(1,128)}', space=vmem, size = 0x12000, scoped, tag = 'internal scratch']
  %s0 = inlined_call_operand.vmem [shape: f32[2,4,256], index: 0, kind: input, shape index: {}]
  %s1 = inlined_call_operand.vmem [shape: f32[32,4], index: 1, kind: input, shape index: {}]
  %s2 = inlined_call_operand.vmem [shape: f32[32,1], index: 2, kind: input, shape index: {}]
  %s3 = inlined_call_operand.vmem [shape: f32[32,3], index: 3, kind: input, shape index: {}]
  %s4 = inlined_call_operand.vmem [shape: f32[32,1], index: 4, kind: input, shape index: {}]
  %s5 = inlined_call_operand.vmem [shape: f32[32,1], index: 5, kind: input, shape index: {}]
  %s6 = inlined_call_operand.vmem [shape: f32[32,1], index: 6, kind: input, shape index: {}]
  %s7 = inlined_call_operand.hbm [shape: f32[2,32,256], index: 7, kind: output, shape index: {}]
  %s8 = sld [smem:[#allocation0]]
  $region61: #{tpu_custom_call.1} parent=0
    _
  %s10 = ssub.s32 1, %s8
  %s11 = scalar_select 0, %s10, %s8
  $region1: #{tpu_custom_call.1} parent=0
    #allocation2 [shape = 'u8[65536]{0}', space=vmem, size = 0x10000, scoped, tag = 'output window, operand 0']
    #allocation3 [shape = 's32[2]{0}', space=sflag, size = 0x8, scoped, tag = 'scoped memory for tpu_custom_call.1']
    %12 = vsyncpa [#allocation3], 0
    %s13 = scalar_lea.sflag [#allocation3], 1
    %14 = vsyncpa %s13, 0
    loop: start=0, step=1, limit=4
    $region2: #{tpu_custom_call.1} parent=1 // loop_pre_header
      _
    $region3: #{tpu_custom_call.1} parent=1 // loop_header
      %s16 = sphi 0, %s20
      %p17 = scmp.ge.s32.totalorder %s16, 4
      %s26 = sphi 0, %s28
      %s29 = sphi 0, %s26
      %s30 = sphi 0, %s29
      %s46 = sphi 0, %s30
      %s50 = sphi 0, %s50
      %s52 = sphi 0, %s50
      %s53 = sphi 0, %s52
      %s67 = sphi 0, %s53
      %s71 = sphi 0, %s71
      %s73 = sphi 0, %s71
      %s74 = sphi 0, %s73
      %s88 = sphi 0, %s74
      %s92 = sphi 0, %s92
      %s94 = sphi 0, %s92
      %s95 = sphi 0, %s94
      %s109 = sphi 0, %s95
      %s113 = sphi 0, %s113
      %s115 = sphi 0, %s113
      %s116 = sphi 0, %s115
      %s130 = sphi 0, %s116
      %s134 = sphi 0, %s134
      %s136 = sphi 0, %s134
      %s137 = sphi 0, %s136
      %s151 = sphi 0, %s137
      %s155 = sphi 0, %s155
      %s157 = sphi 0, %s155
      %s158 = sphi 0, %s157
      %s172 = sphi 0, %s158
      %s178 = sphi 0, %s180
      %s181 = sphi 0, %s178
      %s182 = sphi 0, %s181
      %s198 = sphi 0, %s182
    $region4: #{tpu_custom_call.1} parent=1 // loop_header_branch
      %19 = sbr.rel (%p17) target = $region8
    $region5: #{tpu_custom_call.1} parent=1 // loop_body
      %s21 = ssub.s32 %s16, 1
      %s22 = ssub.s32 %s16, 2
      %s23 = sadd.s32 %s16, 1
      %s24 = ssub.s32 %s16, %s23
      %p25 = scmp.eq.s32.totalorder %s24, 0
      %s27 = sadd.s32 %s26, 1
      %s28 = scalar_select %p25, %s26, %s27
      %p31 = pneg %p25
      %p32 = scmp.eq.s32.totalorder %s16, 1
      %p33 = por %p31, %p32
      %p34 = scmp.ne.s32.totalorder %s26, %s29
      %p35 = scmp.eq.s32.totalorder %s16, 0
      %p36 = por %p34, %p35
      %p37 = scmp.ne.s32.totalorder %s26, %s29
      %p38 = scmp.eq.s32.totalorder %s21, 1
      %p39 = por %p37, %p38
      %p40 = scmp.ne.s32.totalorder %s29, %s30
      %p41 = scmp.eq.s32.totalorder %s21, 0
      %p42 = por %p40, %p41
      %p43 = scmp.ne.s32.totalorder %s29, %s30
      %p44 = scmp.eq.s32.totalorder %s22, 1
      %p45 = por %p43, %p44
      %p47 = scmp.ne.s32.totalorder %s30, %s46
      %p48 = scmp.eq.s32.totalorder %s22, 0
      %p49 = por %p47, %p48
      %s51 = sadd.s32 %s50, 1
      %p54 = scmp.eq.s32.totalorder %s16, 1
      %p55 = scmp.ne.s32.totalorder %s50, %s52
      %p56 = scmp.eq.s32.totalorder %s16, 0
      %p57 = por %p55, %p56
      %p58 = scmp.ne.s32.totalorder %s50, %s52
      %p59 = scmp.eq.s32.totalorder %s21, 1
      %p60 = por %p58, %p59
      %p61 = scmp.ne.s32.totalorder %s52, %s53
      %p62 = scmp.eq.s32.totalorder %s21, 0
      %p63 = por %p61, %p62
      %p64 = scmp.ne.s32.totalorder %s52, %s53
      %p65 = scmp.eq.s32.totalorder %s22, 1
      %p66 = por %p64, %p65
      %p68 = scmp.ne.s32.totalorder %s53, %s67
      %p69 = scmp.eq.s32.totalorder %s22, 0
      %p70 = por %p68, %p69
      %s72 = sadd.s32 %s71, 1
      %p75 = scmp.eq.s32.totalorder %s16, 1
      %p76 = scmp.ne.s32.totalorder %s71, %s73
      %p77 = scmp.eq.s32.totalorder %s16, 0
      %p78 = por %p76, %p77
      %p79 = scmp.ne.s32.totalorder %s71, %s73
      %p80 = scmp.eq.s32.totalorder %s21, 1
      %p81 = por %p79, %p80
      %p82 = scmp.ne.s32.totalorder %s73, %s74
      %p83 = scmp.eq.s32.totalorder %s21, 0
      %p84 = por %p82, %p83
      %p85 = scmp.ne.s32.totalorder %s73, %s74
      %p86 = scmp.eq.s32.totalorder %s22, 1
      %p87 = por %p85, %p86
      %p89 = scmp.ne.s32.totalorder %s74, %s88
      %p90 = scmp.eq.s32.totalorder %s22, 0
      %p91 = por %p89, %p90
      %s93 = sadd.s32 %s92, 1
      %p96 = scmp.eq.s32.totalorder %s16, 1
      %p97 = scmp.ne.s32.totalorder %s92, %s94
      %p98 = scmp.eq.s32.totalorder %s16, 0
      %p99 = por %p97, %p98
      %p100 = scmp.ne.s32.totalorder %s92, %s94
      %p101 = scmp.eq.s32.totalorder %s21, 1
      %p102 = por %p100, %p101
      %p103 = scmp.ne.s32.totalorder %s94, %s95
      %p104 = scmp.eq.s32.totalorder %s21, 0
      %p105 = por %p103, %p104
      %p106 = scmp.ne.s32.totalorder %s94, %s95
      %p107 = scmp.eq.s32.totalorder %s22, 1
      %p108 = por %p106, %p107
      %p110 = scmp.ne.s32.totalorder %s95, %s109
      %p111 = scmp.eq.s32.totalorder %s22, 0
      %p112 = por %p110, %p111
      %s114 = sadd.s32 %s113, 1
      %p117 = scmp.eq.s32.totalorder %s16, 1
      %p118 = scmp.ne.s32.totalorder %s113, %s115
      %p119 = scmp.eq.s32.totalorder %s16, 0
      %p120 = por %p118, %p119
      %p121 = scmp.ne.s32.totalorder %s113, %s115
      %p122 = scmp.eq.s32.totalorder %s21, 1
      %p123 = por %p121, %p122
      %p124 = scmp.ne.s32.totalorder %s115, %s116
      %p125 = scmp.eq.s32.totalorder %s21, 0
      %p126 = por %p124, %p125
      %p127 = scmp.ne.s32.totalorder %s115, %s116
      %p128 = scmp.eq.s32.totalorder %s22, 1
      %p129 = por %p127, %p128
      %p131 = scmp.ne.s32.totalorder %s116, %s130
      %p132 = scmp.eq.s32.totalorder %s22, 0
      %p133 = por %p131, %p132
      %s135 = sadd.s32 %s134, 1
      %p138 = scmp.eq.s32.totalorder %s16, 1
      %p139 = scmp.ne.s32.totalorder %s134, %s136
      %p140 = scmp.eq.s32.totalorder %s16, 0
      %p141 = por %p139, %p140
      %p142 = scmp.ne.s32.totalorder %s134, %s136
      %p143 = scmp.eq.s32.totalorder %s21, 1
      %p144 = por %p142, %p143
      %p145 = scmp.ne.s32.totalorder %s136, %s137
      %p146 = scmp.eq.s32.totalorder %s21, 0
      %p147 = por %p145, %p146
      %p148 = scmp.ne.s32.totalorder %s136, %s137
      %p149 = scmp.eq.s32.totalorder %s22, 1
      %p150 = por %p148, %p149
      %p152 = scmp.ne.s32.totalorder %s137, %s151
      %p153 = scmp.eq.s32.totalorder %s22, 0
      %p154 = por %p152, %p153
      %s156 = sadd.s32 %s155, 1
      %p159 = scmp.eq.s32.totalorder %s16, 1
      %p160 = scmp.ne.s32.totalorder %s155, %s157
      %p161 = scmp.eq.s32.totalorder %s16, 0
      %p162 = por %p160, %p161
      %p163 = scmp.ne.s32.totalorder %s155, %s157
      %p164 = scmp.eq.s32.totalorder %s21, 1
      %p165 = por %p163, %p164
      %p166 = scmp.ne.s32.totalorder %s157, %s158
      %p167 = scmp.eq.s32.totalorder %s21, 0
      %p168 = por %p166, %p167
      %p169 = scmp.ne.s32.totalorder %s157, %s158
      %p170 = scmp.eq.s32.totalorder %s22, 1
      %p171 = por %p169, %p170
      %p173 = scmp.ne.s32.totalorder %s158, %s172
      %p174 = scmp.eq.s32.totalorder %s22, 0
      %p175 = por %p173, %p174
      %s176 = ssub.s32 %s16, %s23
      %p177 = scmp.eq.s32.totalorder %s176, 0
      %s179 = sadd.s32 %s178, 1
      %s180 = scalar_select %p177, %s178, %s179
      %p183 = pneg %p177
      %p184 = scmp.eq.s32.totalorder %s16, 1
      %p185 = por %p183, %p184
      %p186 = scmp.ne.s32.totalorder %s178, %s181
      %p187 = scmp.eq.s32.totalorder %s16, 0
      %p188 = por %p186, %p187
      %p189 = scmp.ne.s32.totalorder %s178, %s181
      %p190 = scmp.eq.s32.totalorder %s21, 1
      %p191 = por %p189, %p190
      %p192 = scmp.ne.s32.totalorder %s181, %s182
      %p193 = scmp.eq.s32.totalorder %s21, 0
      %p194 = por %p192, %p193
      %p195 = scmp.ne.s32.totalorder %s181, %s182
      %p196 = scmp.eq.s32.totalorder %s22, 1
      %p197 = por %p195, %p196
      %p199 = scmp.ne.s32.totalorder %s182, %s198
      %p200 = scmp.eq.s32.totalorder %s22, 0
      %p201 = por %p199, %p200
      %p202 = scmp.le.s32.totalorder 1, %s16
      %p203 = scmp.lt.s32.totalorder %s16, 3
      %p204 = pnand %p202, %p203
      %p205 = pneg %p204
      // Predicated region
      $region9: #{tpu_custom_call.1} parent=5 // pred_check
        _
      $region10: #{tpu_custom_call.1} parent=5 // pred_check_branch
        %207 = sbr.rel (%p204) target = $region12
      $region11: #{tpu_custom_call.1} parent=5 // pred_region
        %s208 = ssub.s32 %s16, 1
        // Predicated region
        $region13: #{tpu_custom_call.1} parent=11 // pred_check
          %p209 = pneg %p63
        $region14: #{tpu_custom_call.1} parent=11 // pred_check_branch
          %211 = sbr.rel (%p209) target = $region16
        $region15: #{tpu_custom_call.1} parent=11 // pred_region
          _
        $region16: #{tpu_custom_call.1} parent=11 // pred_fallthru
          _
        // Predicated region
        $region17: #{tpu_custom_call.1} parent=11 // pred_check
          %p212 = pneg %p84
        $region18: #{tpu_custom_call.1} parent=11 // pred_check_branch
          %214 = sbr.rel (%p212) target = $region20
        $region19: #{tpu_custom_call.1} parent=11 // pred_region
          _
        $region20: #{tpu_custom_call.1} parent=11 // pred_fallthru
          _
        // Predicated region
        $region21: #{tpu_custom_call.1} parent=11 // pred_check
          %p215 = pneg %p105
        $region22: #{tpu_custom_call.1} parent=11 // pred_check_branch
          %217 = sbr.rel (%p215) target = $region24
        $region23: #{tpu_custom_call.1} parent=11 // pred_region
          _
        $region24: #{tpu_custom_call.1} parent=11 // pred_fallthru
          _
        // Predicated region
        $region25: #{tpu_custom_call.1} parent=11 // pred_check
          %p218 = pneg %p126
        $region26: #{tpu_custom_call.1} parent=11 // pred_check_branch
          %220 = sbr.rel (%p218) target = $region28
        $region27: #{tpu_custom_call.1} parent=11 // pred_region
          _
        $region28: #{tpu_custom_call.1} parent=11 // pred_fallthru
          _
        // Predicated region
        $region29: #{tpu_custom_call.1} parent=11 // pred_check
          %p221 = pneg %p147
        $region30: #{tpu_custom_call.1} parent=11 // pred_check_branch
          %223 = sbr.rel (%p221) target = $region32
        $region31: #{tpu_custom_call.1} parent=11 // pred_region
          _
        $region32: #{tpu_custom_call.1} parent=11 // pred_fallthru
          _
        // Predicated region
        $region33: #{tpu_custom_call.1} parent=11 // pred_check
          %p224 = pneg %p168
        $region34: #{tpu_custom_call.1} parent=11 // pred_check_branch
          %226 = sbr.rel (%p224) target = $region36
        $region35: #{tpu_custom_call.1} parent=11 // pred_region
          _
        $region36: #{tpu_custom_call.1} parent=11 // pred_fallthru
          _
      $region12: #{tpu_custom_call.1} parent=5 // pred_fallthru
        _
      %p227 = scmp.lt.s32.totalorder %s16, 2
      // Predicated region
      $region37: #{tpu_custom_call.1} parent=5 // pred_check
        %p228 = pneg %p227
      $region38: #{tpu_custom_call.1} parent=5 // pred_check_branch
        %230 = sbr.rel (%p228) target = $region40
      $region39: #{tpu_custom_call.1} parent=5 // pred_region
        // Predicated region
        $region41: #{tpu_custom_call.1} parent=39 // pred_check
          %p231 = pneg %p36
        $region42: #{tpu_custom_call.1} parent=39 // pred_check_branch
          %233 = sbr.rel (%p231) target = $region44
        $region43: #{tpu_custom_call.1} parent=39 // pred_region
          %p234 = scmp.lt.s32.totalorder %s16, 1
          %s235 = scalar_select %p234, %s16, 1
          %s236 = smul.addr %s235, 2
          %s237 = smul.addr %s236, 4
          %s238 = scalar_lea.vmem %s0, %s237
        $region44: #{tpu_custom_call.1} parent=39 // pred_fallthru
          _
      $region40: #{tpu_custom_call.1} parent=5 // pred_fallthru
        _
      %p239 = scmp.le.s32.totalorder 1, %s16
      %p240 = scmp.lt.s32.totalorder %s16, 3
      %p241 = pnand %p239, %p240
      %p242 = pneg %p241
      // Predicated region
      $region45: #{tpu_custom_call.1} parent=5 // pred_check
        _
      $region46: #{tpu_custom_call.1} parent=5 // pred_check_branch
        %244 = sbr.rel (%p241) target = $region48
      $region47: #{tpu_custom_call.1} parent=5 // pred_region
        %s245 = ssub.s32 %s16, 1
        %p246 = scmp.lt.s32.totalorder %s21, 1
        %s247 = scalar_select %p246, %s21, 1
        %s248 = smul.addr %s247, 2
        %s249 = smul.addr %s248, 4
        %s250 = scalar_lea.vmem %s0, %s249
        %p251 = pneg %p42
        %p252 = pneg %p39
        %p253 = pneg %p63
        %p254 = pneg %p60
        %p255 = pneg %p84
        %p256 = pneg %p81
        %p257 = pneg %p105
        %p258 = pneg %p102
        %p259 = pneg %p126
        %p260 = pneg %p123
        %p261 = pneg %p147
        %p262 = pneg %p144
        %p263 = pneg %p168
        %p264 = pneg %p165
        %p265 = pneg %p194
        %p266 = pneg %p191
        %s267 = sand.u32 %s181, 1
        %s268 = scalar_lea.sflag [#allocation3], %s267
        %s269 = sand.u32 %s181, 1
        %s270 = smul.addr %s269, 64
        %s271 = scalar_lea.vmem [#allocation2], %s270
        %p272 = scmp.lt.s32.totalorder %s21, 1
        %s273 = scalar_select %p272, %s21, 1
        %s274 = smul.addr %s273, 2
        %s275 = smul.addr %s274, 4
        %s276 = scalar_lea.vmem %s0, %s275
        %v277 = vld [vmem:[%s276] sm:$0xff]
        %v278 = vld [vmem:[%s1] sm:$0xff]
        %v279 = vld [vmem:[%s1 + $0x8] sm:$0xff]
        %v280 = vld [vmem:[%s1 + $0x10] sm:$0xff]
        %v281 = vld [vmem:[%s1 + $0x18] sm:$0xff]
        %v282 = vld [vmem:[%s2] sm:$0xff]
        %v283 = vld [vmem:[%s2 + $0x8] sm:$0xff]
        %v284 = vld [vmem:[%s2 + $0x10] sm:$0xff]
        %v285 = vld [vmem:[%s2 + $0x18] sm:$0xff]
        %287 = vset.pattern.permute.xlu0 0
        %288 = vperm.xlu0 %287, %v282
        %v289 = vpop.permute.xlu0 %288
        %292 = vset.pattern.permute.xlu0 0
        %293 = vperm.xlu0 %292, %v283
        %v294 = vpop.permute.xlu0 %293
        %297 = vset.pattern.permute.xlu0 0
        %298 = vperm.xlu0 %297, %v284
        %v299 = vpop.permute.xlu0 %298
        %302 = vset.pattern.permute.xlu0 0
        %303 = vperm.xlu0 %302, %v285
        %v304 = vpop.permute.xlu0 %303
        %v307 = vcombine.high %v277, %v277
        %vm308 = vcmask 31744
        %v310 = vsel %vm308, %v278, 0
        %v313 = vsel %vm308, %v279, 0
        %v316 = vsel %vm308, %v280, 0
        %v319 = vsel %vm308, %v281, 0
        %vm321 = vcmask 1043456
        %v322 = vsel %vm321, %v277, 0
        %v324 = vsel %vm321, %v307, 0
        %326 = vmatprep.subr.mxu0 %v324
        %327 = vmatpush1.msra.mxu0 %v322
        %328 = vmatprep.subr.mxu0 0.0
        %329 = vmatpush1.msra.mxu0 0.0
        %330 = vmatprep.subr.mxu0 0.0
        %331 = vmatpush1.msra.mxu0 0.0
        %332 = vmatprep.subr.mxu0 0.0
        %333 = vmatpush1.msra.mxu0 0.0
        %334 = vmatprep.subr.mxu0 0.0
        %335 = vmatpush1.msra.mxu0 0.0
        %336 = vmatprep.subr.mxu0 0.0
        %337 = vmatpush1.msra.mxu0 0.0
        %338 = vmatprep.subr.mxu0 0.0
        %339 = vmatpush1.msra.mxu0 0.0
        %340 = vmatprep.subr.mxu0 0.0
        %341 = vmatpush1.msra.mxu0 0.0
        %342 = vmatprep.subr.mxu0 0.0
        %343 = vmatpush1.msra.mxu0 0.0
        %344 = vmatprep.subr.mxu0 0.0
        %345 = vmatpush1.msra.mxu0 0.0
        %346 = vmatprep.subr.mxu0 0.0
        %347 = vmatpush1.msra.mxu0 0.0
        %348 = vmatprep.subr.mxu0 0.0
        %349 = vmatpush1.msra.mxu0 0.0
        %350 = vmatprep.subr.mxu0 0.0
        %351 = vmatpush1.msra.mxu0 0.0
        %352 = vmatprep.subr.mxu0 0.0
        %353 = vmatpush1.msra.mxu0 0.0
        %354 = vmatprep.subr.mxu0 0.0
        %355 = vmatpush1.msra.mxu0 0.0
        %356 = vmatprep.subr.mxu0 0.0
        %357 = vmatpush1.msra.mxu0 0.0
        %358 = vmatprep.subr.mxu0 0.0
        %359 = vmatpush1.msra.mxu0 0.0
        %360 = vmatprep.subr.mxu0 0.0
        %361 = vmatpush1.msra.mxu0 0.0
        %362 = vmatprep.subr.mxu0 0.0
        %363 = vmatpush1.msra.mxu0 0.0
        %364 = vmatprep.subr.mxu0 0.0
        %365 = vmatpush1.msra.mxu0 0.0
        %366 = vmatprep.subr.mxu0 0.0
        %367 = vmatpush1.msra.mxu0 0.0
        %368 = vmatprep.subr.mxu0 0.0
        %369 = vmatpush1.msra.mxu0 0.0
        %370 = vmatprep.subr.mxu0 0.0
        %371 = vmatpush1.msra.mxu0 0.0
        %372 = vmatprep.subr.mxu0 0.0
        %373 = vmatpush1.msra.mxu0 0.0
        %374 = vmatprep.subr.mxu0 0.0
        %375 = vmatpush1.msra.mxu0 0.0
        %376 = vmatprep.subr.mxu0 0.0
        %377 = vmatpush1.msra.mxu0 0.0
        %378 = vmatprep.subr.mxu0 0.0
        %379 = vmatpush1.msra.mxu0 0.0
        %380 = vmatprep.subr.mxu0 0.0
        %381 = vmatpush1.msra.mxu0 0.0
        %382 = vmatprep.subr.mxu0 0.0
        %383 = vmatpush1.msra.mxu0 0.0
        %384 = vmatprep.subr.mxu0 0.0
        %385 = vmatpush1.msra.mxu0 0.0
        %386 = vmatprep.subr.mxu0 0.0
        %387 = vmatpush1.msra.mxu0 0.0
        %388 = vmatprep.subr.mxu0 0.0
        %389 = vmatpush1.msra.mxu0 0.0
        %390 = vmatprep.mubr.f32.mxu0 0.0
        %391 = vmatmul.mubr.f32.gmra.mrb[0].mxu0 %v310
        %v392 = vpop.f32.mrb[0].mxu0
        %v393 = vadd.f32 %v289, %v392
        %v394 = vpop.f32.mrb[0].mxu0
        %v395 = vadd.f32 %v289, %v394
        %396 = vmatprep.mubr.f32.mxu0 0.0
        %397 = vmatmul.mubr.f32.gmra.mrb[0].mxu0 %v313
        %v398 = vpop.f32.mrb[0].mxu0
        %v399 = vadd.f32 %v294, %v398
        %v400 = vpop.f32.mrb[0].mxu0
        %v401 = vadd.f32 %v294, %v400
        %402 = vmatprep.mubr.f32.mxu0 0.0
        %403 = vmatmul.mubr.f32.gmra.mrb[0].mxu0 %v316
        %v404 = vpop.f32.mrb[0].mxu0
        %v405 = vadd.f32 %v299, %v404
        %v406 = vpop.f32.mrb[0].mxu0
        %v407 = vadd.f32 %v299, %v406
        %408 = vmatprep.mubr.f32.mxu0 0.0
        %409 = vmatmul.mubr.f32.gmra.mrb[0].mxu0 %v319
        %v410 = vpop.f32.mrb[0].mxu0
        %v411 = vadd.f32 %v304, %v410
        %v412 = vpop.f32.mrb[0].mxu0
        %v413 = vadd.f32 %v304, %v412
        %414 = vdwg.mxu0
        %v415 = vld [vmem:[%s3] sm:$0xff]
        %v416 = vld [vmem:[%s3 + $0x8] sm:$0xff]
        %v417 = vld [vmem:[%s3 + $0x10] sm:$0xff]
        %v418 = vld [vmem:[%s3 + $0x18] sm:$0xff]
        %427 = vrot.lane.b32.xlu0 %v393, 1
        %v428 = vpop.permute.xlu0 %427
        %429 = vrot.lane.b32.xlu0 %v395, 1
        %v430 = vpop.permute.xlu0 %429
        %431 = vrot.lane.b32.xlu0 %v399, 1
        %v432 = vpop.permute.xlu0 %431
        %433 = vrot.lane.b32.xlu0 %v401, 1
        %v434 = vpop.permute.xlu0 %433
        %435 = vrot.lane.b32.xlu0 %v405, 1
        %v436 = vpop.permute.xlu0 %435
        %437 = vrot.lane.b32.xlu0 %v407, 1
        %v438 = vpop.permute.xlu0 %437
        %439 = vrot.lane.b32.xlu0 %v411, 1
        %v440 = vpop.permute.xlu0 %439
        %441 = vrot.lane.b32.xlu0 %v413, 1
        %v442 = vpop.permute.xlu0 %441
        %vm443 = vcmask 7168
        %v444 = vsel %vm443, %v428, %v430
        %v445 = vsel %vm443, %v432, %v434
        %v446 = vsel %vm443, %v436, %v438
        %v447 = vsel %vm443, %v440, %v442
        %v456 = vsel %vm443, 0.0, %v428
        %v457 = vsel %vm443, 0.0, %v432
        %v458 = vsel %vm443, 0.0, %v436
        %v459 = vsel %vm443, 0.0, %v440
        %461 = vset.pattern.permute.xlu0 0
        %462 = vperm.xlu0 %461, %v415
        %v463 = vpop.permute.xlu0 %462
        %466 = vset.pattern.permute.xlu0 0
        %467 = vperm.xlu0 %466, %v416
        %v468 = vpop.permute.xlu0 %467
        %471 = vset.pattern.permute.xlu0 0
        %472 = vperm.xlu0 %471, %v417
        %v473 = vpop.permute.xlu0 %472
        %476 = vset.pattern.permute.xlu0 0
        %477 = vperm.xlu0 %476, %v418
        %v478 = vpop.permute.xlu0 %477
        %v480 = vmul.f32 %v463, %v456
        %v481 = vmul.f32 %v463, %v444
        %v482 = vmul.f32 %v468, %v457
        %v483 = vmul.f32 %v468, %v445
        %v484 = vmul.f32 %v473, %v458
        %v485 = vmul.f32 %v473, %v446
        %v486 = vmul.f32 %v478, %v459
        %v487 = vmul.f32 %v478, %v447
        %v488 = vadd.f32 %v480, 0.0
        %v489 = vadd.f32 %v481, 0.0
        %v490 = vadd.f32 %v482, 0.0
        %v491 = vadd.f32 %v483, 0.0
        %v492 = vadd.f32 %v484, 0.0
        %v493 = vadd.f32 %v485, 0.0
        %v494 = vadd.f32 %v486, 0.0
        %v495 = vadd.f32 %v487, 0.0
        %496 = vset.pattern.permute.xlu0 1
        %497 = vperm.xlu0 %496, %v415
        %v498 = vpop.permute.xlu0 %497
        %500 = vset.pattern.permute.xlu0 1
        %501 = vperm.xlu0 %500, %v416
        %v502 = vpop.permute.xlu0 %501
        %504 = vset.pattern.permute.xlu0 1
        %505 = vperm.xlu0 %504, %v417
        %v506 = vpop.permute.xlu0 %505
        %508 = vset.pattern.permute.xlu0 1
        %509 = vperm.xlu0 %508, %v418
        %v510 = vpop.permute.xlu0 %509
        %v512 = vmul.f32 %v498, %v393
        %v513 = vmul.f32 %v498, %v395
        %v514 = vmul.f32 %v502, %v399
        %v515 = vmul.f32 %v502, %v401
        %v516 = vmul.f32 %v506, %v405
        %v517 = vmul.f32 %v506, %v407
        %v518 = vmul.f32 %v510, %v411
        %v519 = vmul.f32 %v510, %v413
        %v520 = vadd.f32 %v488, %v512
        %v521 = vadd.f32 %v489, %v513
        %v522 = vadd.f32 %v490, %v514
        %v523 = vadd.f32 %v491, %v515
        %v524 = vadd.f32 %v492, %v516
        %v525 = vadd.f32 %v493, %v517
        %v526 = vadd.f32 %v494, %v518
        %v527 = vadd.f32 %v495, %v519
        %528 = vrot.lane.b32.xlu0 %v393, 127
        %v529 = vpop.permute.xlu0 %528
        %530 = vrot.lane.b32.xlu0 %v395, 127
        %v531 = vpop.permute.xlu0 %530
        %532 = vrot.lane.b32.xlu0 %v399, 127
        %v533 = vpop.permute.xlu0 %532
        %534 = vrot.lane.b32.xlu0 %v401, 127
        %v535 = vpop.permute.xlu0 %534
        %536 = vrot.lane.b32.xlu0 %v405, 127
        %v537 = vpop.permute.xlu0 %536
        %538 = vrot.lane.b32.xlu0 %v407, 127
        %v539 = vpop.permute.xlu0 %538
        %540 = vrot.lane.b32.xlu0 %v411, 127
        %v541 = vpop.permute.xlu0 %540
        %542 = vrot.lane.b32.xlu0 %v413, 127
        %v543 = vpop.permute.xlu0 %542
        %vm544 = vcmask 1039360
        %v545 = vsel %vm544, %v529, %v531
        %v546 = vsel %vm544, %v533, %v535
        %v547 = vsel %vm544, %v537, %v539
        %v548 = vsel %vm544, %v541, %v543
        %v557 = vsel %vm544, %v531, 0.0
        %v558 = vsel %vm544, %v535, 0.0
        %v559 = vsel %vm544, %v539, 0.0
        %v560 = vsel %vm544, %v543, 0.0
        %561 = vset.pattern.permute.xlu0 2
        %562 = vperm.xlu0 %561, %v415
        %v563 = vpop.permute.xlu0 %562
        %565 = vset.pattern.permute.xlu0 2
        %566 = vperm.xlu0 %565, %v416
        %v567 = vpop.permute.xlu0 %566
        %569 = vset.pattern.permute.xlu0 2
        %570 = vperm.xlu0 %569, %v417
        %v571 = vpop.permute.xlu0 %570
        %573 = vset.pattern.permute.xlu0 2
        %574 = vperm.xlu0 %573, %v418
        %v575 = vpop.permute.xlu0 %574
        %v577 = vmul.f32 %v563, %v545
        %v578 = vmul.f32 %v563, %v557
        %v579 = vmul.f32 %v567, %v546
        %v580 = vmul.f32 %v567, %v558
        %v581 = vmul.f32 %v571, %v547
        %v582 = vmul.f32 %v571, %v559
        %v583 = vmul.f32 %v575, %v548
        %v584 = vmul.f32 %v575, %v560
        %v585 = vadd.f32 %v520, %v577
        %v586 = vadd.f32 %v521, %v578
        %v587 = vadd.f32 %v522, %v579
        %v588 = vadd.f32 %v523, %v580
        %v589 = vadd.f32 %v524, %v581
        %v590 = vadd.f32 %v525, %v582
        %v591 = vadd.f32 %v526, %v583
        %v592 = vadd.f32 %v527, %v584
        %v593 = vld [vmem:[%s4] sm:$0xff]
        %v594 = vld [vmem:[%s4 + $0x8] sm:$0xff]
        %v595 = vld [vmem:[%s4 + $0x10] sm:$0xff]
        %v596 = vld [vmem:[%s4 + $0x18] sm:$0xff]
        %598 = vset.pattern.permute.xlu0 0
        %599 = vperm.xlu0 %598, %v593
        %v600 = vpop.permute.xlu0 %599
        %603 = vset.pattern.permute.xlu0 0
        %604 = vperm.xlu0 %603, %v594
        %v605 = vpop.permute.xlu0 %604
        %608 = vset.pattern.permute.xlu0 0
        %609 = vperm.xlu0 %608, %v595
        %v610 = vpop.permute.xlu0 %609
        %613 = vset.pattern.permute.xlu0 0
        %614 = vperm.xlu0 %613, %v596
        %v615 = vpop.permute.xlu0 %614
        %v617 = vadd.f32 %v585, %v600
        %v618 = vadd.f32 %v586, %v600
        %v619 = vadd.f32 %v587, %v605
        %v620 = vadd.f32 %v588, %v605
        %v621 = vadd.f32 %v589, %v610
        %v622 = vadd.f32 %v590, %v610
        %v623 = vadd.f32 %v591, %v615
        %v624 = vadd.f32 %v592, %v615
        %v625 = vadd.f32 %v617, %v619
        %v626 = vadd.f32 %v625, %v621
        %v627 = vadd.f32 %v626, %v623
        %v628 = vrot.slane %v627, 4
        %v629 = vadd.f32 %v627, %v628
        %v630 = vrot.slane %v629, 2
        %v631 = vadd.f32 %v629, %v630
        %v632 = vrot.slane %v631, 1
        %v633 = vadd.f32 %v631, %v632
        %v634 = vadd.f32 %v618, %v620
        %v635 = vadd.f32 %v634, %v622
        %v636 = vadd.f32 %v635, %v624
        %v637 = vrot.slane %v636, 4
        %v638 = vadd.f32 %v636, %v637
        %v639 = vrot.slane %v638, 2
        %v640 = vadd.f32 %v638, %v639
        %v641 = vrot.slane %v640, 1
        %v642 = vadd.f32 %v640, %v641
        %v643 = vrcp.pop 32.0
        %v644 = vmul.f32 %v633, %v643
        %v645 = vmul.f32 %v642, %v643
        %v646 = vsub.f32 %v617, %v644
        %v647 = vsub.f32 %v618, %v645
        %v648 = vsub.f32 %v619, %v644
        %v649 = vsub.f32 %v620, %v645
        %v650 = vsub.f32 %v621, %v644
        %v651 = vsub.f32 %v622, %v645
        %v652 = vsub.f32 %v623, %v644
        %v653 = vsub.f32 %v624, %v645
        %v654 = vmul.f32 %v646, %v646
        %v655 = vmul.f32 %v647, %v647
        %v656 = vmul.f32 %v648, %v648
        %v657 = vmul.f32 %v649, %v649
        %v658 = vmul.f32 %v650, %v650
        %v659 = vmul.f32 %v651, %v651
        %v660 = vmul.f32 %v652, %v652
        %v661 = vmul.f32 %v653, %v653
        %v662 = vadd.f32 %v654, %v656
        %v663 = vadd.f32 %v662, %v658
        %v664 = vadd.f32 %v663, %v660
        %v665 = vrot.slane %v664, 4
        %v666 = vadd.f32 %v664, %v665
        %v667 = vrot.slane %v666, 2
        %v668 = vadd.f32 %v666, %v667
        %v669 = vrot.slane %v668, 1
        %v670 = vadd.f32 %v668, %v669
        %v671 = vadd.f32 %v655, %v657
        %v672 = vadd.f32 %v671, %v659
        %v673 = vadd.f32 %v672, %v661
        %v674 = vrot.slane %v673, 4
        %v675 = vadd.f32 %v673, %v674
        %v676 = vrot.slane %v675, 2
        %v677 = vadd.f32 %v675, %v676
        %v678 = vrot.slane %v677, 1
        %v679 = vadd.f32 %v677, %v678
        %v680 = vmul.f32 %v670, %v643
        %v681 = vmul.f32 %v679, %v643
        %v682 = vadd.f32 %v680, 1e-06
        %v683 = vadd.f32 %v681, 1e-06
        %v684 = vrsqrt.pop %v682
        %v685 = vrsqrt.pop %v683
        %v686 = vmul.f32 %v646, %v684
        %v687 = vmul.f32 %v647, %v685
        %v688 = vmul.f32 %v648, %v684
        %v689 = vmul.f32 %v649, %v685
        %v690 = vmul.f32 %v650, %v684
        %v691 = vmul.f32 %v651, %v685
        %v692 = vmul.f32 %v652, %v684
        %v693 = vmul.f32 %v653, %v685
        %v694 = vld [vmem:[%s5] sm:$0xff]
        %v695 = vld [vmem:[%s5 + $0x8] sm:$0xff]
        %v696 = vld [vmem:[%s5 + $0x10] sm:$0xff]
        %v697 = vld [vmem:[%s5 + $0x18] sm:$0xff]
        %699 = vset.pattern.permute.xlu0 0
        %700 = vperm.xlu0 %699, %v694
        %v701 = vpop.permute.xlu0 %700
        %704 = vset.pattern.permute.xlu0 0
        %705 = vperm.xlu0 %704, %v695
        %v706 = vpop.permute.xlu0 %705
        %709 = vset.pattern.permute.xlu0 0
        %710 = vperm.xlu0 %709, %v696
        %v711 = vpop.permute.xlu0 %710
        %714 = vset.pattern.permute.xlu0 0
        %715 = vperm.xlu0 %714, %v697
        %v716 = vpop.permute.xlu0 %715
        %v718 = vmul.f32 %v701, %v686
        %v719 = vmul.f32 %v701, %v687
        %v720 = vmul.f32 %v706, %v688
        %v721 = vmul.f32 %v706, %v689
        %v722 = vmul.f32 %v711, %v690
        %v723 = vmul.f32 %v711, %v691
        %v724 = vmul.f32 %v716, %v692
        %v725 = vmul.f32 %v716, %v693
        %v726 = vld [vmem:[%s6] sm:$0xff]
        %v727 = vld [vmem:[%s6 + $0x8] sm:$0xff]
        %v728 = vld [vmem:[%s6 + $0x10] sm:$0xff]
        %v729 = vld [vmem:[%s6 + $0x18] sm:$0xff]
        %731 = vset.pattern.permute.xlu0 0
        %732 = vperm.xlu0 %731, %v726
        %v733 = vpop.permute.xlu0 %732
        %736 = vset.pattern.permute.xlu0 0
        %737 = vperm.xlu0 %736, %v727
        %v738 = vpop.permute.xlu0 %737
        %741 = vset.pattern.permute.xlu0 0
        %742 = vperm.xlu0 %741, %v728
        %v743 = vpop.permute.xlu0 %742
        %746 = vset.pattern.permute.xlu0 0
        %747 = vperm.xlu0 %746, %v729
        %v748 = vpop.permute.xlu0 %747
        %v750 = vadd.f32 %v718, %v733
        %v751 = vadd.f32 %v719, %v733
        %v752 = vadd.f32 %v720, %v738
        %v753 = vadd.f32 %v721, %v738
        %v754 = vadd.f32 %v722, %v743
        %v755 = vadd.f32 %v723, %v743
        %v756 = vadd.f32 %v724, %v748
        %v757 = vadd.f32 %v725, %v748
        %758 = vst [vmem:[%s271] sm:$0xff] %v750
        %759 = vst [vmem:[%s271 + $0x8] sm:$0xff] %v751
        %760 = vst [vmem:[%s271 + $0x10] sm:$0xff] %v752
        %761 = vst [vmem:[%s271 + $0x18] sm:$0xff] %v753
        %762 = vst [vmem:[%s271 + $0x20] sm:$0xff] %v754
        %763 = vst [vmem:[%s271 + $0x28] sm:$0xff] %v755
        %764 = vst [vmem:[%s271 + $0x30] sm:$0xff] %v756
        %765 = vst [vmem:[%s271 + $0x38] sm:$0xff] %v757
        %s766 = sand.u32 %s181, 1
        %s767 = scalar_lea.sflag [#allocation3], %s766
        %s768 = sand.u32 %s181, 1
        %s769 = smul.addr %s768, 64
        %s770 = scalar_lea.vmem [#allocation2], %s769
        // Predicated region
        $region49: #{tpu_custom_call.1} parent=47 // pred_check
          %p771 = pneg %p191
        $region50: #{tpu_custom_call.1} parent=47 // pred_check_branch
          %773 = sbr.rel (%p771) target = $region52
        $region51: #{tpu_custom_call.1} parent=47 // pred_region
          %s775 = ssub.s32 1024, 1024
          %776 = vsyncadd %s767, %s775
          %s777 = smul.addr %s21, 8
          %s778 = smul.addr %s777, 128
          %s779 = scalar_lea.hbm %s7, %s778
          %s780 = sshll.u32 %s770, 4
          %s781 = int_to_ptr.vmem [resolvable:$true] %s780
          %786 = dma.vmem_to_hbm [thread:$0]  %s781, 1024, %s779, %s767, 256, 256, 16
        $region52: #{tpu_custom_call.1} parent=47 // pred_fallthru
          _
      $region48: #{tpu_custom_call.1} parent=5 // pred_fallthru
        _
      %p787 = scmp.le.s32.totalorder 2, %s16
      // Predicated region
      $region53: #{tpu_custom_call.1} parent=5 // pred_check
        %p788 = pneg %p787
      $region54: #{tpu_custom_call.1} parent=5 // pred_check_branch
        %790 = sbr.rel (%p788) target = $region56
      $region55: #{tpu_custom_call.1} parent=5 // pred_region
        %s791 = ssub.s32 %s16, 2
        // Predicated region
        $region57: #{tpu_custom_call.1} parent=55 // pred_check
          %p792 = pneg %p197
        $region58: #{tpu_custom_call.1} parent=55 // pred_check_branch
          %794 = sbr.rel (%p792) target = $region60
        $region59: #{tpu_custom_call.1} parent=55 // pred_region
          %s795 = sand.u32 %s182, 1
          %s796 = scalar_lea.sflag [#allocation3], %s795
          %s797 = sand.u32 %s182, 1
          %s798 = smul.addr %s797, 64
          %s799 = scalar_lea.vmem [#allocation2], %s798
          %800 = dma.done %s796, 1024
        $region60: #{tpu_custom_call.1} parent=55 // pred_fallthru
          _
      $region56: #{tpu_custom_call.1} parent=5 // pred_fallthru
        _
    $region6: #{tpu_custom_call.1} parent=1 // loop_footer
      %s20 = sadd.s32 1, %s16
    $region7: #{tpu_custom_call.1} parent=1 // loop_footer_branch
      %15 = sbr.rel target = $region3
    $region8: #{tpu_custom_call.1} parent=1 // loop_exit
      _
    %801 = vsyncpa [#allocation3], 1
    %s802 = scalar_lea.sflag [#allocation3], 1
    %803 = vsyncpa %s802, 1

</llo_original>
